<compile_context>
chip_gen: v5e
topology: v5e:2x2
jax: 0.10.0
libtpu: 0.0.40
codegen_flags: <defaults>
</compile_context>

<pallas_src>
import functools

import jax
import jax.numpy as jnp
from jax.experimental import pallas as pl
from jax.experimental.pallas import tpu as pltpu


def _round_up(n, m):
    return ((n + m - 1) // m) * m


def _pick_tm(m, tm_max, quantum):
    """Row tile: multiple of `quantum`, <= tm_max, and leaving >=2 grid steps
    (so v7x's two TensorCores both get work) whenever M is large enough."""
    m_r = _round_up(m, quantum)
    if m_r >= 2 * quantum:
        tm = min(tm_max, _round_up(m_r // 2, quantum))
    else:
        tm = m_r
    return max(tm, quantum)


def _pick_tile(dim, cap, quantum):
    """Largest multiple of `quantum` that divides `dim` and is <= cap (dim is a
    multiple of quantum)."""
    t = min(cap, dim)
    t = (t // quantum) * quantum
    while dim % t != 0:
        t -= quantum
    return max(t, quantum)


# --------------------------------------------------------------------------- #
# Fused (all layers in one pallas_call) kernel
# --------------------------------------------------------------------------- #

def _fused_mlp_kernel(x_ref, *refs, num_layers, operand_dtype):
    """x_ref: (tm, K0) input dtype; refs = (w0, b0, ..., wL-1, bL-1, o_ref).

    Weights are (Kp, Np) operand dtype, biases (1, Np) f32, o_ref (tm, NLp) out
    dtype.  Hidden activations stay in VMEM/vregs (never written back to HBM).
    """
    o_ref = refs[-1]
    wb_refs = refs[:-1]

    h = x_ref[...].astype(operand_dtype)                    # cast in-kernel (no x_pad)
    for i in range(num_layers):
        w = wb_refs[2 * i][...]                              # (Kp, Np) operand dtype
        b = wb_refs[2 * i + 1][...]                          # (1, Np)  f32
        y = jnp.dot(h, w, preferred_element_type=jnp.float32)   # MXU, f32 accumulate
        y = y + b
        if i < num_layers - 1:
            y = y * jax.nn.sigmoid(y)                        # SiLU in f32 (v5e-safe)
            h = y.astype(operand_dtype)
        else:
            h = y
    o_ref[...] = h.astype(o_ref.dtype)


# --------------------------------------------------------------------------- #
# K/N-tiled per-layer fallback kernel (used when weights don't fit VMEM)
# --------------------------------------------------------------------------- #

def _linear_kernel(x_ref, w_ref, b_ref, o_ref, acc_ref, *, apply_silu, operand_dtype):
    @pl.when(pl.program_id(2) == 0)
    def _init():
        acc_ref[...] = jnp.zeros_like(acc_ref)

    acc_ref[...] += jnp.dot(x_ref[...].astype(operand_dtype), w_ref[...],
                            preferred_element_type=jnp.float32)

    @pl.when(pl.program_id(2) == pl.num_programs(2) - 1)
    def _finalize():
        y = acc_ref[...] + b_ref[...]
        if apply_silu:
            y = y * jax.nn.sigmoid(y)
        o_ref[...] = y.astype(o_ref.dtype)


def _linear_pallas(x, w, b, *, apply_silu, operand_dtype, out_dtype, tm,
                   vmem_limit, interpret=False):
    m, k = x.shape
    kw, n = w.shape
    assert kw == k and m % tm == 0 and n % 128 == 0
    tk = _pick_tile(k, 512, 128) if k % 128 == 0 else k      # k == full dim is legal
    tn = _pick_tile(n, 256, 128)
    grid = (m // tm, n // tn, k // tk)

    kernel = functools.partial(_linear_kernel, apply_silu=apply_silu,
                               operand_dtype=operand_dtype)
    return pl.pallas_call(
        kernel,
        out_shape=jax.ShapeDtypeStruct((m, n), out_dtype),
        grid=grid,
        in_specs=[pl.BlockSpec((tm, tk), lambda i, j, kk: (i, kk)),
                  pl.BlockSpec((tk, tn), lambda i, j, kk: (kk, j)),
                  pl.BlockSpec((1, tn), lambda i, j, kk: (0, j))],
        out_specs=pl.BlockSpec((tm, tn), lambda i, j, kk: (i, j)),
        scratch_shapes=[pltpu.VMEM((tm, tn), jnp.float32)],
        compiler_params=pltpu.CompilerParams(
            dimension_semantics=("parallel", "parallel", "arbitrary"),
            vmem_limit_bytes=vmem_limit),
        cost_estimate=pl.CostEstimate(
            flops=2 * m * k * n,
            transcendentals=m * n if apply_silu else 0,
            bytes_accessed=int(x.size * x.dtype.itemsize
                               + w.size * w.dtype.itemsize + b.size * 4
                               + m * n * jnp.dtype(out_dtype).itemsize)),
        interpret=interpret,
    )(x, w, b)


# --------------------------------------------------------------------------- #
# Parameter preparation (done ONCE, hoisted out of the forward pass)
# --------------------------------------------------------------------------- #

def prepare_mlp_params(params, *, operand_dtype=jnp.bfloat16, lane=128):
    """Pad + cast weights once.  W stored (in_features, out_features).

    Layer 0 keeps its true K (x is streamed unpadded); every out dim is padded to
    a lane multiple; layer i>0's K is padded to layer i-1's padded out dim.
    Padded rows/cols are zero, so padded activation lanes stay exactly zero
    through every layer (SiLU(0) = 0).
    """
    # TODO(synk): when real hidden dims exceed 128, pass lane=256 on v6e/v7x
    # (256x256 MXU) and keep lane=128 on v5e.
    num_layers = len(params)
    dims_in = [w.shape[0] for w, _ in params]
    dims_out = [w.shape[1] for w, _ in params]
    pads_out = [_round_up(d, lane) for d in dims_out]
    pads_in = [dims_in[0]] + pads_out[:-1]

    flat_wb = []
    for li, (w, b) in enumerate(params):
        kin, kout = w.shape
        kin_p, kout_p = pads_in[li], pads_out[li]
        w_p = jnp.zeros((kin_p, kout_p), operand_dtype).at[:kin, :kout].set(
            jnp.asarray(w).astype(operand_dtype))
        b_p = jnp.zeros((1, kout_p), jnp.float32).at[0, :kout].set(
            jnp.asarray(b).astype(jnp.float32))
        flat_wb += [w_p, b_p]

    return dict(flat_wb=tuple(flat_wb), num_layers=num_layers,
                dims_in=tuple(dims_in), dims_out=tuple(dims_out),
                pads_in=tuple(pads_in), pads_out=tuple(pads_out),
                operand_dtype=operand_dtype)


# --------------------------------------------------------------------------- #
# Forward
# --------------------------------------------------------------------------- #

def mlp_forward(prepared, x, *, out_dtype=jnp.bfloat16, tm_max=256,
                force_layerwise=False, interpret=False):
    """MLP forward using pre-padded params.  Pass out_dtype=jnp.float32 to match
    the PyTorch module's output dtype exactly (bf16 halves the output HBM bytes)."""
    flat_wb = prepared["flat_wb"]
    num_layers = prepared["num_layers"]
    dims_in, dims_out = prepared["dims_in"], prepared["dims_out"]
    pads_in, pads_out = prepared["pads_in"], prepared["pads_out"]
    operand_dtype = prepared["operand_dtype"]

    lead_shape = x.shape[:-1]
    x2 = x.reshape(-1, x.shape[-1])
    M, K0 = x2.shape
    assert K0 == dims_in[0], "input feature dim mismatch"
    N_last, N_last_pad = dims_out[-1], pads_out[-1]
    out_itemsize = jnp.dtype(out_dtype).itemsize
    op_itemsize = jnp.dtype(operand_dtype).itemsize

    # Row quantum: 16 when a sub-32-bit dtype is involved (bf16 sublane packing).
    quantum = 16 if min(op_itemsize, out_itemsize) < 4 else 8
    tm = _pick_tm(M, tm_max, quantum)
    M_pad = _round_up(M, tm)
    grid_m = M_pad // tm

    # Cheap row-only pad of x when needed (feature dim & dtype untouched).
    x_in = x2 if M_pad == M else jnp.zeros((M_pad, K0), x2.dtype).at[:M].set(x2)

    # Generation-aware VMEM budget: ~96 MiB on v5e/v6e (128 MiB), ~48 MiB on v7x (64 MiB).
    try:
        vmem_cap = int(pltpu.get_tpu_info().vmem_capacity_bytes)
    except Exception:
        vmem_cap = 64 * 1024 * 1024          # conservative: assume v7x-sized VMEM
    vmem_limit = (vmem_cap * 3) // 4

    wb_bytes = sum(a.size * a.dtype.itemsize for a in flat_wb)
    max_np = max(pads_out)
    fused_resident = (wb_bytes                                   # single-buffered weights
                      + 2 * tm * K0 * x2.dtype.itemsize          # double-buffered x tile
                      + 2 * tm * N_last_pad * out_itemsize       # double-buffered out tile
                      + 2 * tm * max_np * (4 + op_itemsize))     # live f32 y + bf16 h
    use_fused = (not force_layerwise) and fused_resident <= vmem_limit

    if use_fused:
        flops = sum(2 * M_pad * pads_in[l] * pads_out[l] for l in range(num_layers))
        transcendentals = M_pad * sum(pads_out[:-1])
        bytes_accessed = int(x_in.size * x_in.dtype.itemsize + wb_bytes
                             + M_pad * N_last_pad * out_itemsize)
        kernel = functools.partial(_fused_mlp_kernel, num_layers=num_layers,
                                   operand_dtype=operand_dtype)

        def call_fused(single_buffer_weights):
            wb_kwargs = ({"pipeline_mode": pl.Buffered(1)}
                         if single_buffer_weights else {})
            in_specs = [pl.BlockSpec((tm, K0), lambda i: (i, 0))]
            for a in flat_wb:
                # Grid-invariant weights/biases: resident, single-buffered.
                in_specs.append(pl.BlockSpec(a.shape, lambda i: (0, 0), **wb_kwargs))
            return pl.pallas_call(
                kernel,
                out_shape=jax.ShapeDtypeStruct((M_pad, N_last_pad), out_dtype),
                grid=(grid_m,),
                in_specs=in_specs,
                out_specs=pl.BlockSpec((tm, N_last_pad), lambda i: (i, 0)),
                compiler_params=pltpu.CompilerParams(
                    dimension_semantics=("parallel",),   # M axis -> v7x dual-TC sharding
                    vmem_limit_bytes=vmem_limit),
                cost_estimate=pl.CostEstimate(
                    flops=flops, transcendentals=transcendentals,
                    bytes_accessed=bytes_accessed),
                interpret=interpret,
            )(x_in, *flat_wb)

        try:
            out_pad = call_fused(True)
        except Exception:
            # pipeline_mode=pl.Buffered(1) not supported on this jax version/backend;
            # fall back to default (double-buffered) grid-invariant weight specs.
            out_pad = call_fused(False)
    else:
        # Layer-by-layer K/N-tiled path for weights that don't fit VMEM resident.
        h = x_in
        for li in range(num_layers):
            last = li == num_layers - 1
            h = _linear_pallas(
                h, flat_wb[2 * li], flat_wb[2 * li + 1],
                apply_silu=not last, operand_dtype=operand_dtype,
                out_dtype=out_dtype if last else operand_dtype,
                tm=tm, vmem_limit=vmem_limit, interpret=interpret)
        out_pad = h

    # TODO(synk): if the consumer can take the lane-padded (M_pad, 128) slab, drop
    # this slice (it costs an extra HBM pass in XLA).
    out = out_pad[:M, :N_last]
    return out.reshape(*lead_shape, N_last)


# --------------------------------------------------------------------------- #
# Init + pure-JAX references
# --------------------------------------------------------------------------- #

def init_mlp_params(key, input_dim, hidden_dim, output_dim, num_layers):
    """Mirror the PyTorch module's init.  Weights stored (in_features, out_features).

    Hidden layers: nn.Linear default ~ U(-1/sqrt(fan_in), 1/sqrt(fan_in)).
    Last layer: weight ~ N(0, 0.001), bias = 0.
    """
    h = [hidden_dim] * (num_layers - 1)
    dims_in = [input_dim] + h
    dims_out = h + [output_dim]
    params = []
    for li, (n_in, n_out) in enumerate(zip(dims_in, dims_out)):
        key, kw, kb = jax.random.split(key, 3)
        if li == num_layers - 1:
            w = 0.001 * jax.random.normal(kw, (n_in, n_out), dtype=jnp.float32)
            b = jnp.zeros((n_out,), dtype=jnp.float32)
        else:
            bound = 1.0 / jnp.sqrt(jnp.float32(n_in))
            w = jax.random.uniform(kw, (n_in, n_out), jnp.float32, -bound, bound)
            b = jax.random.uniform(kb, (n_out,), jnp.float32, -bound, bound)
        params.append((w, b))
    return params


def mlp_forward_ref(params, x, operand_dtype=jnp.bfloat16):
    """Pure-JAX reference with the same bf16-operand / f32-accumulate recipe."""
    num_layers = len(params)
    h = x.astype(operand_dtype)
    y = None
    for i, (w, b) in enumerate(params):
        y = jnp.dot(h, w.astype(operand_dtype),
                    preferred_element_type=jnp.float32) + b.astype(jnp.float32)
        if i < num_layers - 1:
            y = y * jax.nn.sigmoid(y)
            h = y.astype(operand_dtype)
    return y


def mlp_forward_ref_f32(params, x):
    """Full-f32 reference matching the PyTorch module's math."""
    num_layers = len(params)
    for i, (w, b) in enumerate(params):
        y = x @ w + b
        x = y * jax.nn.sigmoid(y) if i < num_layers - 1 else y
    return x


if __name__ == "__main__":
    key = jax.random.PRNGKey(0)
    batch, input_dim, hidden_dim, output_dim, num_layers = 8, 32, 64, 16, 3

    kx, kp = jax.random.split(key)
    x = jax.random.normal(kx, (batch, input_dim), dtype=jnp.float32)
    params = init_mlp_params(kp, input_dim, hidden_dim, output_dim, num_layers)

    # Hoisted: pad/cast all weights exactly once.
    prepared = prepare_mlp_params(params)

    out = jax.block_until_ready(mlp_forward(prepared, x))
    assert out.shape == (batch, output_dim)

    ref_bf16 = jax.block_until_ready(mlp_forward_ref(params, x))
    ref_f32 = jax.block_until_ready(mlp_forward_ref_f32(params, x))

    out_f32 = out.astype(jnp.float32)
    assert jnp.allclose(out_f32, ref_bf16, atol=2e-3, rtol=2e-2), \
        "mismatch vs bf16-path reference"
    assert jnp.allclose(out_f32, ref_f32, atol=3e-2, rtol=3e-2), \
        "mismatch vs f32 reference"

    # Also exercise the K/N-tiled layer-wise fallback (auto-selected when resident
    # weights would not fit VMEM, e.g. large hidden dims on v7x).
    out_lw = jax.block_until_ready(mlp_forward(prepared, x, force_layerwise=True))
    assert jnp.allclose(out_lw.astype(jnp.float32), ref_bf16, atol=2e-3, rtol=2e-2), \
        "layerwise path mismatch vs bf16-path reference"

    print("KERNEL_OK")
</pallas_src>

<mosaic_0001>
module attributes {stable_mosaic.version = 11 : i64} {
  func.func @_fused_mlp_kernel(%arg0: i32, %arg1: memref<16x32xf32, #tpu.memory_space<vmem>>, %arg2: memref<32x128xbf16, #tpu.memory_space<vmem>>, %arg3: memref<1x128xf32, #tpu.memory_space<vmem>>, %arg4: memref<128x128xbf16, #tpu.memory_space<vmem>>, %arg5: memref<1x128xf32, #tpu.memory_space<vmem>>, %arg6: memref<128x128xbf16, #tpu.memory_space<vmem>>, %arg7: memref<1x128xf32, #tpu.memory_space<vmem>>, %arg8: memref<16x128xbf16, #tpu.memory_space<vmem>>) attributes {dimension_semantics = [#tpu.dimension_semantics<parallel>], iteration_bounds = array<i64: 1>, scalar_prefetch = 0 : i64, scratch_operands = 0 : i64, tpu.core_type = #tpu.core_type<tc>, window_params = [{transform_indices = @transform_0, window_bounds = array<i64: 16, 32>}, {pipeline_mode = #tpu.pipeline_mode<synchronous>, transform_indices = @transform_1, window_bounds = array<i64: 32, 128>}, {pipeline_mode = #tpu.pipeline_mode<synchronous>, transform_indices = @transform_2, window_bounds = array<i64: 1, 128>}, {pipeline_mode = #tpu.pipeline_mode<synchronous>, transform_indices = @transform_3, window_bounds = array<i64: 128, 128>}, {pipeline_mode = #tpu.pipeline_mode<synchronous>, transform_indices = @transform_4, window_bounds = array<i64: 1, 128>}, {pipeline_mode = #tpu.pipeline_mode<synchronous>, transform_indices = @transform_5, window_bounds = array<i64: 128, 128>}, {pipeline_mode = #tpu.pipeline_mode<synchronous>, transform_indices = @transform_6, window_bounds = array<i64: 1, 128>}, {transform_indices = @transform_7, window_bounds = array<i64: 16, 128>}]} {
    %c0 = arith.constant 0 : index
    %c0_0 = arith.constant 0 : index
    %0 = vector.load %arg1[%c0, %c0_0] : memref<16x32xf32, #tpu.memory_space<vmem>>, vector<16x32xf32>
    %1 = arith.truncf %0 : vector<16x32xf32> to vector<16x32xbf16>
    %c0_1 = arith.constant 0 : index
    %c0_2 = arith.constant 0 : index
    %2 = vector.load %arg2[%c0_1, %c0_2] : memref<32x128xbf16, #tpu.memory_space<vmem>>, vector<32x128xbf16>
    %c0_3 = arith.constant 0 : index
    %c0_4 = arith.constant 0 : index
    %3 = vector.load %arg3[%c0_3, %c0_4] : memref<1x128xf32, #tpu.memory_space<vmem>>, vector<1x128xf32>
    %cst = arith.constant dense<0.000000e+00> : vector<16x128xf32>
    %4 = tpu.matmul %1, %2, %cst {dimension_numbers = #tpu.dot_dimension_numbers<[1], [0], [0], [1], [0, 0, 1, 1], [], []>} : vector<16x32xbf16>, vector<32x128xbf16>, vector<16x128xf32> -> vector<16x128xf32>
    %5 = vector.broadcast %3 : vector<1x128xf32> to vector<16x128xf32>
    %6 = arith.addf %4, %5 : vector<16x128xf32>
    %7 = arith.negf %6 : vector<16x128xf32>
    %8 = math.exp %7 : vector<16x128xf32>
    %cst_5 = arith.constant 1.000000e+00 : f32
    %9 = vector.broadcast %cst_5 : f32 to vector<16x128xf32>
    %10 = arith.addf %9, %8 : vector<16x128xf32>
    %11 = arith.divf %9, %10 : vector<16x128xf32>
    %12 = arith.mulf %6, %11 : vector<16x128xf32>
    %13 = arith.truncf %12 : vector<16x128xf32> to vector<16x128xbf16>
    %c0_6 = arith.constant 0 : index
    %c0_7 = arith.constant 0 : index
    %14 = vector.load %arg4[%c0_6, %c0_7] : memref<128x128xbf16, #tpu.memory_space<vmem>>, vector<128x128xbf16>
    %c0_8 = arith.constant 0 : index
    %c0_9 = arith.constant 0 : index
    %15 = vector.load %arg5[%c0_8, %c0_9] : memref<1x128xf32, #tpu.memory_space<vmem>>, vector<1x128xf32>
    %cst_10 = arith.constant dense<0.000000e+00> : vector<16x128xf32>
    %16 = tpu.matmul %13, %14, %cst_10 {dimension_numbers = #tpu.dot_dimension_numbers<[1], [0], [0], [1], [0, 0, 1, 1], [], []>} : vector<16x128xbf16>, vector<128x128xbf16>, vector<16x128xf32> -> vector<16x128xf32>
    %17 = vector.broadcast %15 : vector<1x128xf32> to vector<16x128xf32>
    %18 = arith.addf %16, %17 : vector<16x128xf32>
    %19 = arith.negf %18 : vector<16x128xf32>
    %20 = math.exp %19 : vector<16x128xf32>
    %cst_11 = arith.constant 1.000000e+00 : f32
    %21 = vector.broadcast %cst_11 : f32 to vector<16x128xf32>
    %22 = arith.addf %21, %20 : vector<16x128xf32>
    %23 = arith.divf %21, %22 : vector<16x128xf32>
    %24 = arith.mulf %18, %23 : vector<16x128xf32>
    %25 = arith.truncf %24 : vector<16x128xf32> to vector<16x128xbf16>
    %c0_12 = arith.constant 0 : index
    %c0_13 = arith.constant 0 : index
    %26 = vector.load %arg6[%c0_12, %c0_13] : memref<128x128xbf16, #tpu.memory_space<vmem>>, vector<128x128xbf16>
    %c0_14 = arith.constant 0 : index
    %c0_15 = arith.constant 0 : index
    %27 = vector.load %arg7[%c0_14, %c0_15] : memref<1x128xf32, #tpu.memory_space<vmem>>, vector<1x128xf32>
    %cst_16 = arith.constant dense<0.000000e+00> : vector<16x128xf32>
    %28 = tpu.matmul %25, %26, %cst_16 {dimension_numbers = #tpu.dot_dimension_numbers<[1], [0], [0], [1], [0, 0, 1, 1], [], []>} : vector<16x128xbf16>, vector<128x128xbf16>, vector<16x128xf32> -> vector<16x128xf32>
    %29 = vector.broadcast %27 : vector<1x128xf32> to vector<16x128xf32>
    %30 = arith.addf %28, %29 : vector<16x128xf32>
    %31 = arith.truncf %30 : vector<16x128xf32> to vector<16x128xbf16>
    %c0_17 = arith.constant 0 : index
    %c0_18 = arith.constant 0 : index
    %32 = vector.load %arg8[%c0_17, %c0_18] : memref<16x128xbf16, #tpu.memory_space<vmem>>, vector<16x128xbf16>
    tpu.vector_store %arg8[%c0_17, %c0_18], %31 {strides = array<i32>} : memref<16x128xbf16, #tpu.memory_space<vmem>>, vector<16x128xbf16>,
    return
  }
  func.func @transform_0(%arg0: i32) -> (i32, i32) {
    %c0_i32 = arith.constant 0 : i32
    %c0_i32_0 = arith.constant 0 : i32
    return %arg0, %c0_i32 : i32, i32
  }
  func.func @transform_1(%arg0: i32) -> (i32, i32) {
    %c0_i32 = arith.constant 0 : i32
    %c0_i32_0 = arith.constant 0 : i32
    %c0_i32_1 = arith.constant 0 : i32
    return %c0_i32, %c0_i32_0 : i32, i32
  }
  func.func @transform_2(%arg0: i32) -> (i32, i32) {
    %c0_i32 = arith.constant 0 : i32
    %c0_i32_0 = arith.constant 0 : i32
    %c0_i32_1 = arith.constant 0 : i32
    return %c0_i32, %c0_i32_0 : i32, i32
  }
  func.func @transform_3(%arg0: i32) -> (i32, i32) {
    %c0_i32 = arith.constant 0 : i32
    %c0_i32_0 = arith.constant 0 : i32
    %c0_i32_1 = arith.constant 0 : i32
    return %c0_i32, %c0_i32_0 : i32, i32
  }
  func.func @transform_4(%arg0: i32) -> (i32, i32) {
    %c0_i32 = arith.constant 0 : i32
    %c0_i32_0 = arith.constant 0 : i32
    %c0_i32_1 = arith.constant 0 : i32
    return %c0_i32, %c0_i32_0 : i32, i32
  }
  func.func @transform_5(%arg0: i32) -> (i32, i32) {
    %c0_i32 = arith.constant 0 : i32
    %c0_i32_0 = arith.constant 0 : i32
    %c0_i32_1 = arith.constant 0 : i32
    return %c0_i32, %c0_i32_0 : i32, i32
  }
  func.func @transform_6(%arg0: i32) -> (i32, i32) {
    %c0_i32 = arith.constant 0 : i32
    %c0_i32_0 = arith.constant 0 : i32
    %c0_i32_1 = arith.constant 0 : i32
    return %c0_i32, %c0_i32_0 : i32, i32
  }
  func.func @transform_7(%arg0: i32) -> (i32, i32) {
    %c0_i32 = arith.constant 0 : i32
    %c0_i32_0 = arith.constant 0 : i32
    return %arg0, %c0_i32 : i32, i32
  }
}

module attributes {stable_mosaic.version = 11 : i64} {
  func.func @_fused_mlp_kernel(%arg0: i32, %arg1: memref<16x32xf32, #tpu.memory_space<vmem>>, %arg2: memref<32x128xbf16, #tpu.memory_space<vmem>>, %arg3: memref<1x128xf32, #tpu.memory_space<vmem>>, %arg4: memref<128x128xbf16, #tpu.memory_space<vmem>>, %arg5: memref<1x128xf32, #tpu.memory_space<vmem>>, %arg6: memref<128x128xbf16, #tpu.memory_space<vmem>>, %arg7: memref<1x128xf32, #tpu.memory_space<vmem>>, %arg8: memref<16x128xbf16, #tpu.memory_space<vmem>>) attributes {dimension_semantics = [#tpu.dimension_semantics<parallel>], iteration_bounds = array<i64: 1>, scalar_prefetch = 0 : i64, scratch_operands = 0 : i64, tpu.core_type = #tpu.core_type<tc>, window_params = [{transform_indices = @transform_0, window_bounds = array<i64: 16, 32>}, {pipeline_mode = #tpu.pipeline_mode<synchronous>, transform_indices = @transform_1, window_bounds = array<i64: 32, 128>}, {pipeline_mode = #tpu.pipeline_mode<synchronous>, transform_indices = @transform_2, window_bounds = array<i64: 1, 128>}, {pipeline_mode = #tpu.pipeline_mode<synchronous>, transform_indices = @transform_3, window_bounds = array<i64: 128, 128>}, {pipeline_mode = #tpu.pipeline_mode<synchronous>, transform_indices = @transform_4, window_bounds = array<i64: 1, 128>}, {pipeline_mode = #tpu.pipeline_mode<synchronous>, transform_indices = @transform_5, window_bounds = array<i64: 128, 128>}, {pipeline_mode = #tpu.pipeline_mode<synchronous>, transform_indices = @transform_6, window_bounds = array<i64: 1, 128>}, {transform_indices = @transform_7, window_bounds = array<i64: 16, 128>}]} {
    %c0 = arith.constant 0 : index
    %c0_0 = arith.constant 0 : index
    %0 = vector.load %arg1[%c0, %c0_0] : memref<16x32xf32, #tpu.memory_space<vmem>>, vector<16x32xf32>
    %1 = arith.truncf %0 : vector<16x32xf32> to vector<16x32xbf16>
    %c0_1 = arith.constant 0 : index
    %c0_2 = arith.constant 0 : index
    %2 = vector.load %arg2[%c0_1, %c0_2] : memref<32x128xbf16, #tpu.memory_space<vmem>>, vector<32x128xbf16>
    %c0_3 = arith.constant 0 : index
    %c0_4 = arith.constant 0 : index
    %3 = vector.load %arg3[%c0_3, %c0_4] : memref<1x128xf32, #tpu.memory_space<vmem>>, vector<1x128xf32>
    %cst = arith.constant dense<0.000000e+00> : vector<16x128xf32>
    %4 = tpu.matmul %1, %2, %cst {dimension_numbers = #tpu.dot_dimension_numbers<[1], [0], [0], [1], [0, 0, 1, 1], [], []>} : vector<16x32xbf16>, vector<32x128xbf16>, vector<16x128xf32> -> vector<16x128xf32>
    %5 = vector.broadcast %3 : vector<1x128xf32> to vector<16x128xf32>
    %6 = arith.addf %4, %5 : vector<16x128xf32>
    %7 = arith.negf %6 : vector<16x128xf32>
    %8 = math.exp %7 : vector<16x128xf32>
    %cst_5 = arith.constant 1.000000e+00 : f32
    %9 = vector.broadcast %cst_5 : f32 to vector<16x128xf32>
    %10 = arith.addf %9, %8 : vector<16x128xf32>
    %11 = arith.divf %9, %10 : vector<16x128xf32>
    %12 = arith.mulf %6, %11 : vector<16x128xf32>
    %13 = arith.truncf %12 : vector<16x128xf32> to vector<16x128xbf16>
    %c0_6 = arith.constant 0 : index
    %c0_7 = arith.constant 0 : index
    %14 = vector.load %arg4[%c0_6, %c0_7] : memref<128x128xbf16, #tpu.memory_space<vmem>>, vector<128x128xbf16>
    %c0_8 = arith.constant 0 : index
    %c0_9 = arith.constant 0 : index
    %15 = vector.load %arg5[%c0_8, %c0_9] : memref<1x128xf32, #tpu.memory_space<vmem>>, vector<1x128xf32>
    %cst_10 = arith.constant dense<0.000000e+00> : vector<16x128xf32>
    %16 = tpu.matmul %13, %14, %cst_10 {dimension_numbers = #tpu.dot_dimension_numbers<[1], [0], [0], [1], [0, 0, 1, 1], [], []>} : vector<16x128xbf16>, vector<128x128xbf16>, vector<16x128xf32> -> vector<16x128xf32>
    %17 = vector.broadcast %15 : vector<1x128xf32> to vector<16x128xf32>
    %18 = arith.addf %16, %17 : vector<16x128xf32>
    %19 = arith.negf %18 : vector<16x128xf32>
    %20 = math.exp %19 : vector<16x128xf32>
    %cst_11 = arith.constant 1.000000e+00 : f32
    %21 = vector.broadcast %cst_11 : f32 to vector<16x128xf32>
    %22 = arith.addf %21, %20 : vector<16x128xf32>
    %23 = arith.divf %21, %22 : vector<16x128xf32>
    %24 = arith.mulf %18, %23 : vector<16x128xf32>
    %25 = arith.truncf %24 : vector<16x128xf32> to vector<16x128xbf16>
    %c0_12 = arith.constant 0 : index
    %c0_13 = arith.constant 0 : index
    %26 = vector.load %arg6[%c0_12, %c0_13] : memref<128x128xbf16, #tpu.memory_space<vmem>>, vector<128x128xbf16>
    %c0_14 = arith.constant 0 : index
    %c0_15 = arith.constant 0 : index
    %27 = vector.load %arg7[%c0_14, %c0_15] : memref<1x128xf32, #tpu.memory_space<vmem>>, vector<1x128xf32>
    %cst_16 = arith.constant dense<0.000000e+00> : vector<16x128xf32>
    %28 = tpu.matmul %25, %26, %cst_16 {dimension_numbers = #tpu.dot_dimension_numbers<[1], [0], [0], [1], [0, 0, 1, 1], [], []>} : vector<16x128xbf16>, vector<128x128xbf16>, vector<16x128xf32> -> vector<16x128xf32>
    %29 = vector.broadcast %27 : vector<1x128xf32> to vector<16x128xf32>
    %30 = arith.addf %28, %29 : vector<16x128xf32>
    %31 = arith.truncf %30 : vector<16x128xf32> to vector<16x128xbf16>
    %c0_17 = arith.constant 0 : index
    %c0_18 = arith.constant 0 : index
    %32 = vector.load %arg8[%c0_17, %c0_18] : memref<16x128xbf16, #tpu.memory_space<vmem>>, vector<16x128xbf16>
    tpu.vector_store %arg8[%c0_17, %c0_18], %31 {strides = array<i32>} : memref<16x128xbf16, #tpu.memory_space<vmem>>, vector<16x128xbf16>,
    return
  }
  func.func @transform_0(%arg0: i32) -> (i32, i32) {
    %c0_i32 = arith.constant 0 : i32
    %c0_i32_0 = arith.constant 0 : i32
    return %arg0, %c0_i32 : i32, i32
  }
  func.func @transform_1(%arg0: i32) -> (i32, i32) {
    %c0_i32 = arith.constant 0 : i32
    %c0_i32_0 = arith.constant 0 : i32
    %c0_i32_1 = arith.constant 0 : i32
    return %c0_i32, %c0_i32_0 : i32, i32
  }
  func.func @transform_2(%arg0: i32) -> (i32, i32) {
    %c0_i32 = arith.constant 0 : i32
    %c0_i32_0 = arith.constant 0 : i32
    %c0_i32_1 = arith.constant 0 : i32
    return %c0_i32, %c0_i32_0 : i32, i32
  }
  func.func @transform_3(%arg0: i32) -> (i32, i32) {
    %c0_i32 = arith.constant 0 : i32
    %c0_i32_0 = arith.constant 0 : i32
    %c0_i32_1 = arith.constant 0 : i32
    return %c0_i32, %c0_i32_0 : i32, i32
  }
  func.func @transform_4(%arg0: i32) -> (i32, i32) {
    %c0_i32 = arith.constant 0 : i32
    %c0_i32_0 = arith.constant 0 : i32
    %c0_i32_1 = arith.constant 0 : i32
    return %c0_i32, %c0_i32_0 : i32, i32
  }
  func.func @transform_5(%arg0: i32) -> (i32, i32) {
    %c0_i32 = arith.constant 0 : i32
    %c0_i32_0 = arith.constant 0 : i32
    %c0_i32_1 = arith.constant 0 : i32
    return %c0_i32, %c0_i32_0 : i32, i32
  }
  func.func @transform_6(%arg0: i32) -> (i32, i32) {
    %c0_i32 = arith.constant 0 : i32
    %c0_i32_0 = arith.constant 0 : i32
    %c0_i32_1 = arith.constant 0 : i32
    return %c0_i32, %c0_i32_0 : i32, i32
  }
  func.func @transform_7(%arg0: i32) -> (i32, i32) {
    %c0_i32 = arith.constant 0 : i32
    %c0_i32_0 = arith.constant 0 : i32
    return %arg0, %c0_i32 : i32, i32
  }
}

</mosaic_0001>

<llo_original>
// kernel: tpu_custom_call.1
$region0: #{tpu_custom_call.1}
  #allocation0 [shape = 'u32[]', space=smem, size = 0x4, offset = 0x4, fixed_abs, tag = 'smem constant byte address 0x4 - core index']
  #allocation1 [shape = 'u32[72,128]{1,0:T(1,128)}', space=vmem, size = 0x9000, scoped, tag = 'internal scratch']
  %s0 = inlined_call_operand.hbm [shape: f32[16,32], index: 0, kind: input, shape index: {}]
  %s1 = inlined_call_operand.hbm [shape: bf16[32,128], index: 1, kind: input, shape index: {}]
  %s2 = inlined_call_operand.vmem [shape: f32[1,128], index: 2, kind: input, shape index: {}]
  %s3 = inlined_call_operand.hbm [shape: bf16[128,128], index: 3, kind: input, shape index: {}]
  %s4 = inlined_call_operand.vmem [shape: f32[1,128], index: 4, kind: input, shape index: {}]
  %s5 = inlined_call_operand.hbm [shape: bf16[128,128], index: 5, kind: input, shape index: {}]
  %s6 = inlined_call_operand.vmem [shape: f32[1,128], index: 6, kind: input, shape index: {}]
  %s7 = inlined_call_operand.hbm [shape: bf16[16,128], index: 7, kind: output, shape index: {}]
  %s8 = sld [smem:[#allocation0]]
  $region54: #{tpu_custom_call.1} parent=0
    _
  %s10 = ssub.s32 1, %s8
  %s11 = scalar_select 0, %s10, %s8
  $region1: #{tpu_custom_call.1} parent=0
    #allocation2 [shape = 'u8[8192]{0}', space=vmem, size = 0x2000, scoped, tag = 'input window, operand 0, single buffered']
    #allocation3 [shape = 's32[1]{0}', space=sflag, size = 0x4, scoped, tag = 'scoped memory for tpu_custom_call.1']
    #allocation4 [shape = 's32[1]{0}', space=sflag, size = 0x4, scoped, tag = 'scoped memory for tpu_custom_call.1']
    #allocation5 [shape = 'u8[8192]{0}', space=vmem, size = 0x2000, scoped, tag = 'input window, operand 1, single buffered']
    #allocation6 [shape = 's32[1]{0}', space=sflag, size = 0x4, scoped, tag = 'scoped memory for tpu_custom_call.1']
    #allocation7 [shape = 'u8[32768]{0}', space=vmem, size = 0x8000, scoped, tag = 'input window, operand 3, single buffered']
    #allocation8 [shape = 'u8[32768]{0}', space=vmem, size = 0x8000, scoped, tag = 'input window, operand 5, single buffered']
    #allocation9 [shape = 's32[1]{0}', space=sflag, size = 0x4, scoped, tag = 'scoped memory for tpu_custom_call.1']
    #allocation10 [shape = 'u8[4096]{0}', space=vmem, size = 0x1000, scoped, tag = 'output window, operand 0, single buffered']
    %12 = vsyncpa [#allocation3], 0
    %13 = vsyncpa [#allocation6], 0
    %14 = vsyncpa [#allocation9], 0
    %15 = vsyncpa [#allocation4], 0
    // Predicated region
    $region2: #{tpu_custom_call.1} parent=1 // pred_check
      _
    $region3: #{tpu_custom_call.1} parent=1 // pred_check_branch
      %17 = sbr.rel (0) target = $region5
    $region4: #{tpu_custom_call.1} parent=1 // pred_region
      %19 = vsyncadd [#allocation3], 0
      %s20 = sshll.u32 %s0, 4
      %s21 = int_to_ptr.hbm [resolvable:$true] %s20
      %s22 = sshll.u32 [#allocation2], 4
      %s23 = int_to_ptr.vmem [resolvable:$true] %s22
      %28 = dma.hbm_to_vmem [thread:$0]  %s21, 256, %s23, [#allocation3], 128, 128, 8
    $region5: #{tpu_custom_call.1} parent=1 // pred_fallthru
      _
    // Predicated region
    $region6: #{tpu_custom_call.1} parent=1 // pred_check
      _
    $region7: #{tpu_custom_call.1} parent=1 // pred_check_branch
      %30 = sbr.rel (0) target = $region9
    $region8: #{tpu_custom_call.1} parent=1 // pred_region
      %32 = vsyncadd [#allocation6], 0
      %s33 = sshll.u32 %s1, 4
      %s34 = int_to_ptr.hbm [resolvable:$true] %s33
      %s35 = sshll.u32 [#allocation5], 4
      %s36 = int_to_ptr.vmem [resolvable:$true] %s35
      %41 = dma.hbm_to_vmem [thread:$0]  %s34, 256, %s36, [#allocation6], 64, 64, 4
    $region9: #{tpu_custom_call.1} parent=1 // pred_fallthru
      _
    // Predicated region
    $region10: #{tpu_custom_call.1} parent=1 // pred_check
      _
    $region11: #{tpu_custom_call.1} parent=1 // pred_check_branch
      %43 = sbr.rel (0) target = $region13
    $region12: #{tpu_custom_call.1} parent=1 // pred_region
      _
    $region13: #{tpu_custom_call.1} parent=1 // pred_fallthru
      _
    // Predicated region
    $region14: #{tpu_custom_call.1} parent=1 // pred_check
      _
    $region15: #{tpu_custom_call.1} parent=1 // pred_check_branch
      %45 = sbr.rel (0) target = $region17
    $region16: #{tpu_custom_call.1} parent=1 // pred_region
      %47 = vsyncadd [#allocation6], 0
      %s48 = sshll.u32 %s3, 4
      %s49 = int_to_ptr.hbm [resolvable:$true] %s48
      %s50 = sshll.u32 [#allocation7], 4
      %s51 = int_to_ptr.vmem [resolvable:$true] %s50
      %56 = dma.hbm_to_vmem [thread:$0]  %s49, 1024, %s51, [#allocation6], 64, 64, 4
    $region17: #{tpu_custom_call.1} parent=1 // pred_fallthru
      _
    // Predicated region
    $region18: #{tpu_custom_call.1} parent=1 // pred_check
      _
    $region19: #{tpu_custom_call.1} parent=1 // pred_check_branch
      %58 = sbr.rel (0) target = $region21
    $region20: #{tpu_custom_call.1} parent=1 // pred_region
      _
    $region21: #{tpu_custom_call.1} parent=1 // pred_fallthru
      _
    // Predicated region
    $region22: #{tpu_custom_call.1} parent=1 // pred_check
      _
    $region23: #{tpu_custom_call.1} parent=1 // pred_check_branch
      %60 = sbr.rel (0) target = $region25
    $region24: #{tpu_custom_call.1} parent=1 // pred_region
      %62 = vsyncadd [#allocation9], 0
      %s63 = sshll.u32 %s5, 4
      %s64 = int_to_ptr.hbm [resolvable:$true] %s63
      %s65 = sshll.u32 [#allocation8], 4
      %s66 = int_to_ptr.vmem [resolvable:$true] %s65
      %71 = dma.hbm_to_vmem [thread:$0]  %s64, 1024, %s66, [#allocation9], 64, 64, 4
    $region25: #{tpu_custom_call.1} parent=1 // pred_fallthru
      _
    // Predicated region
    $region26: #{tpu_custom_call.1} parent=1 // pred_check
      _
    $region27: #{tpu_custom_call.1} parent=1 // pred_check_branch
      %73 = sbr.rel (0) target = $region29
    $region28: #{tpu_custom_call.1} parent=1 // pred_region
      _
    $region29: #{tpu_custom_call.1} parent=1 // pred_fallthru
      _
    // Predicated region
    $region30: #{tpu_custom_call.1} parent=1 // pred_check
      _
    $region31: #{tpu_custom_call.1} parent=1 // pred_check_branch
      %75 = sbr.rel (0) target = $region33
    $region32: #{tpu_custom_call.1} parent=1 // pred_region
      %77 = dma.done [#allocation3], 256
    $region33: #{tpu_custom_call.1} parent=1 // pred_fallthru
      _
    // Predicated region
    $region34: #{tpu_custom_call.1} parent=1 // pred_check
      _
    $region35: #{tpu_custom_call.1} parent=1 // pred_check_branch
      %79 = sbr.rel (0) target = $region37
    $region36: #{tpu_custom_call.1} parent=1 // pred_region
      %81 = dma.done [#allocation6], 256
    $region37: #{tpu_custom_call.1} parent=1 // pred_fallthru
      _
    // Predicated region
    $region38: #{tpu_custom_call.1} parent=1 // pred_check
      _
    $region39: #{tpu_custom_call.1} parent=1 // pred_check_branch
      %83 = sbr.rel (0) target = $region41
    $region40: #{tpu_custom_call.1} parent=1 // pred_region
      %85 = dma.done [#allocation6], 1024
    $region41: #{tpu_custom_call.1} parent=1 // pred_fallthru
      _
    // Predicated region
    $region42: #{tpu_custom_call.1} parent=1 // pred_check
      _
    $region43: #{tpu_custom_call.1} parent=1 // pred_check_branch
      %87 = sbr.rel (0) target = $region45
    $region44: #{tpu_custom_call.1} parent=1 // pred_region
      %89 = dma.done [#allocation9], 1024
    $region45: #{tpu_custom_call.1} parent=1 // pred_fallthru
      _
    %v91 = vld [vmem:[#allocation2] sm:$0xff]
    %v92 = vld [vmem:[#allocation2 + $0x8] sm:$0xff]
    %v93 = vpack.c.bf16 %v92, %v91
    %v94 = vld [vmem:[#allocation5] sm:$0xf]
    %v95 = vld [vmem:[#allocation5 + $0x4] sm:$0xf]
    %v96 = vld [vmem:[#allocation5 + $0x8] sm:$0xf]
    %v97 = vld [vmem:[#allocation5 + $0xc] sm:$0xf]
    %v98 = vld [vmem:[%s2] sm:$0x1]
    %v100 = vperm.slane %v98, 0
    %v106 = vunpack.c.l.b16 %v94
    %v107 = vunpack.c.l.b16 %v95
    %v108 = vunpack.c.l.b16 %v96
    %v109 = vunpack.c.l.b16 %v97
    %v110 = vpack.c.b16 %v107, %v106
    %v111 = vpack.c.b16 %v109, %v108
    %vm114 = vcmask 261120
    %v116 = vsel %vm114, %v93, 0
    %118 = vmatpush.bf16.msra.mxu0 0
    %119 = vmatpush.bf16.msra.mxu0 0
    %120 = vmatpush.bf16.msra.mxu0 0
    %121 = vmatpush.bf16.msra.mxu0 0
    %122 = vmatpush.bf16.msra.mxu0 0
    %123 = vmatpush.bf16.msra.mxu0 0
    %124 = vmatpush.bf16.msra.mxu0 %v111
    %125 = vmatpush.bf16.msra.mxu0 %v110
    %126 = vmatmul.bf16.gmra.mxu0 %v116
    %v127 = vpop.f32.mrf.mxu0
    %v128 = vadd.f32 %v100, %v127
    %v129 = vpop.f32.mrf.mxu0
    %v130 = vadd.f32 %v100, %v129
    %131 = vdwg.mxu0
    %v132 = vxor.u32 %v128, 2147483648
    %v133 = vxor.u32 %v130, 2147483648
    %v134 = vmul.f32 %v132, 1.442695
    %v135 = vpow.pop %v134
    %v136 = vmul.f32 %v133, 1.442695
    %v137 = vpow.pop %v136
    %v138 = vadd.f32 %v135, 1.0
    %v139 = vadd.f32 %v137, 1.0
    %v140 = vrcp.pop %v138
    %v141 = vmul.f32 %v138, %v140
    %v142 = vsub.f32 1.0, %v141
    %v143 = vmul.f32 %v140, %v142
    %v144 = vadd.f32 %v140, %v143
    %vm145 = vweird.f32 %v138
    %vm146 = vweird.f32 %v140
    %vm147 = vmor %vm145, %vm146
    %v148 = vsel %vm147, %v140, %v144
    %v149 = vand.u32 2147483647, %v138
    %vm150 = vcmp.eq.f32.partialorder %v149, 8.507059e+37
    %v151 = vand.u32 %v138, 2147483648
    %v152 = vor.u32 1.1754944e-38, %v151
    %v153 = vsel %vm150, %v152, %v148
    %v154 = vmul.f32 1.0, %v153
    %v155 = vrcp.pop %v139
    %v156 = vmul.f32 %v139, %v155
    %v157 = vsub.f32 1.0, %v156
    %v158 = vmul.f32 %v155, %v157
    %v159 = vadd.f32 %v155, %v158
    %vm160 = vweird.f32 %v139
    %vm161 = vweird.f32 %v155
    %vm162 = vmor %vm160, %vm161
    %v163 = vsel %vm162, %v155, %v159
    %v164 = vand.u32 2147483647, %v139
    %vm165 = vcmp.eq.f32.partialorder %v164, 8.507059e+37
    %v166 = vand.u32 %v139, 2147483648
    %v167 = vor.u32 1.1754944e-38, %v166
    %v168 = vsel %vm165, %v167, %v163
    %v169 = vmul.f32 1.0, %v168
    %v170 = vmul.f32 %v128, %v154
    %v171 = vmul.f32 %v130, %v169
    %v172 = vpack.c.bf16 %v171, %v170
    %v173 = vld [vmem:[#allocation7] sm:$0xf]
    %v174 = vld [vmem:[#allocation7 + $0x4] sm:$0xf]
    %v175 = vld [vmem:[#allocation7 + $0x8] sm:$0xf]
    %v176 = vld [vmem:[#allocation7 + $0xc] sm:$0xf]
    %v177 = vld [vmem:[#allocation7 + $0x10] sm:$0xf]
    %v178 = vld [vmem:[#allocation7 + $0x14] sm:$0xf]
    %v179 = vld [vmem:[#allocation7 + $0x18] sm:$0xf]
    %v180 = vld [vmem:[#allocation7 + $0x1c] sm:$0xf]
    %v181 = vld [vmem:[#allocation7 + $0x20] sm:$0xf]
    %v182 = vld [vmem:[#allocation7 + $0x24] sm:$0xf]
    %v183 = vld [vmem:[#allocation7 + $0x28] sm:$0xf]
    %v184 = vld [vmem:[#allocation7 + $0x2c] sm:$0xf]
    %v185 = vld [vmem:[#allocation7 + $0x30] sm:$0xf]
    %v186 = vld [vmem:[#allocation7 + $0x34] sm:$0xf]
    %v187 = vld [vmem:[#allocation7 + $0x38] sm:$0xf]
    %v188 = vld [vmem:[#allocation7 + $0x3c] sm:$0xf]
    %v189 = vld [vmem:[%s4] sm:$0x1]
    %v191 = vperm.slane %v189, 0
    %v209 = vunpack.c.l.b16 %v173
    %v210 = vunpack.c.l.b16 %v174
    %v211 = vunpack.c.l.b16 %v175
    %v212 = vunpack.c.l.b16 %v176
    %v213 = vunpack.c.l.b16 %v177
    %v214 = vunpack.c.l.b16 %v178
    %v215 = vunpack.c.l.b16 %v179
    %v216 = vunpack.c.l.b16 %v180
    %v217 = vunpack.c.l.b16 %v181
    %v218 = vunpack.c.l.b16 %v182
    %v219 = vunpack.c.l.b16 %v183
    %v220 = vunpack.c.l.b16 %v184
    %v221 = vunpack.c.l.b16 %v185
    %v222 = vunpack.c.l.b16 %v186
    %v223 = vunpack.c.l.b16 %v187
    %v224 = vunpack.c.l.b16 %v188
    %v225 = vpack.c.b16 %v210, %v209
    %v226 = vpack.c.b16 %v212, %v211
    %v227 = vpack.c.b16 %v214, %v213
    %v228 = vpack.c.b16 %v216, %v215
    %v229 = vpack.c.b16 %v218, %v217
    %v230 = vpack.c.b16 %v220, %v219
    %v231 = vpack.c.b16 %v222, %v221
    %v232 = vpack.c.b16 %v224, %v223
    %241 = vmatpush.bf16.msra.mxu0 %v232
    %242 = vmatpush.bf16.msra.mxu0 %v231
    %243 = vmatpush.bf16.msra.mxu0 %v230
    %244 = vmatpush.bf16.msra.mxu0 %v229
    %245 = vmatpush.bf16.msra.mxu0 %v228
    %246 = vmatpush.bf16.msra.mxu0 %v227
    %247 = vmatpush.bf16.msra.mxu0 %v226
    %248 = vmatpush.bf16.msra.mxu0 %v225
    %249 = vmatmul.bf16.gmra.mxu0 %v172
    %v250 = vpop.f32.mrf.mxu0
    %v251 = vadd.f32 %v191, %v250
    %v252 = vpop.f32.mrf.mxu0
    %v253 = vadd.f32 %v191, %v252
    %254 = vdwg.mxu0
    %v255 = vxor.u32 %v251, 2147483648
    %v256 = vxor.u32 %v253, 2147483648
    %v257 = vmul.f32 %v255, 1.442695
    %v258 = vpow.pop %v257
    %v259 = vmul.f32 %v256, 1.442695
    %v260 = vpow.pop %v259
    %v261 = vadd.f32 %v258, 1.0
    %v262 = vadd.f32 %v260, 1.0
    %v263 = vrcp.pop %v261
    %v264 = vmul.f32 %v261, %v263
    %v265 = vsub.f32 1.0, %v264
    %v266 = vmul.f32 %v263, %v265
    %v267 = vadd.f32 %v263, %v266
    %vm268 = vweird.f32 %v261
    %vm269 = vweird.f32 %v263
    %vm270 = vmor %vm268, %vm269
    %v271 = vsel %vm270, %v263, %v267
    %v272 = vand.u32 2147483647, %v261
    %vm273 = vcmp.eq.f32.partialorder %v272, 8.507059e+37
    %v274 = vand.u32 %v261, 2147483648
    %v275 = vor.u32 1.1754944e-38, %v274
    %v276 = vsel %vm273, %v275, %v271
    %v277 = vmul.f32 1.0, %v276
    %v278 = vrcp.pop %v262
    %v279 = vmul.f32 %v262, %v278
    %v280 = vsub.f32 1.0, %v279
    %v281 = vmul.f32 %v278, %v280
    %v282 = vadd.f32 %v278, %v281
    %vm283 = vweird.f32 %v262
    %vm284 = vweird.f32 %v278
    %vm285 = vmor %vm283, %vm284
    %v286 = vsel %vm285, %v278, %v282
    %v287 = vand.u32 2147483647, %v262
    %vm288 = vcmp.eq.f32.partialorder %v287, 8.507059e+37
    %v289 = vand.u32 %v262, 2147483648
    %v290 = vor.u32 1.1754944e-38, %v289
    %v291 = vsel %vm288, %v290, %v286
    %v292 = vmul.f32 1.0, %v291
    %v293 = vmul.f32 %v251, %v277
    %v294 = vmul.f32 %v253, %v292
    %v295 = vpack.c.bf16 %v294, %v293
    %v296 = vld [vmem:[#allocation8] sm:$0xf]
    %v297 = vld [vmem:[#allocation8 + $0x4] sm:$0xf]
    %v298 = vld [vmem:[#allocation8 + $0x8] sm:$0xf]
    %v299 = vld [vmem:[#allocation8 + $0xc] sm:$0xf]
    %v300 = vld [vmem:[#allocation8 + $0x10] sm:$0xf]
    %v301 = vld [vmem:[#allocation8 + $0x14] sm:$0xf]
    %v302 = vld [vmem:[#allocation8 + $0x18] sm:$0xf]
    %v303 = vld [vmem:[#allocation8 + $0x1c] sm:$0xf]
    %v304 = vld [vmem:[#allocation8 + $0x20] sm:$0xf]
    %v305 = vld [vmem:[#allocation8 + $0x24] sm:$0xf]
    %v306 = vld [vmem:[#allocation8 + $0x28] sm:$0xf]
    %v307 = vld [vmem:[#allocation8 + $0x2c] sm:$0xf]
    %v308 = vld [vmem:[#allocation8 + $0x30] sm:$0xf]
    %v309 = vld [vmem:[#allocation8 + $0x34] sm:$0xf]
    %v310 = vld [vmem:[#allocation8 + $0x38] sm:$0xf]
    %v311 = vld [vmem:[#allocation8 + $0x3c] sm:$0xf]
    %v312 = vld [vmem:[%s6] sm:$0x1]
    %v314 = vperm.slane %v312, 0
    %v332 = vunpack.c.l.b16 %v296
    %v333 = vunpack.c.l.b16 %v297
    %v334 = vunpack.c.l.b16 %v298
    %v335 = vunpack.c.l.b16 %v299
    %v336 = vunpack.c.l.b16 %v300
    %v337 = vunpack.c.l.b16 %v301
    %v338 = vunpack.c.l.b16 %v302
    %v339 = vunpack.c.l.b16 %v303
    %v340 = vunpack.c.l.b16 %v304
    %v341 = vunpack.c.l.b16 %v305
    %v342 = vunpack.c.l.b16 %v306
    %v343 = vunpack.c.l.b16 %v307
    %v344 = vunpack.c.l.b16 %v308
    %v345 = vunpack.c.l.b16 %v309
    %v346 = vunpack.c.l.b16 %v310
    %v347 = vunpack.c.l.b16 %v311
    %v348 = vpack.c.b16 %v333, %v332
    %v349 = vpack.c.b16 %v335, %v334
    %v350 = vpack.c.b16 %v337, %v336
    %v351 = vpack.c.b16 %v339, %v338
    %v352 = vpack.c.b16 %v341, %v340
    %v353 = vpack.c.b16 %v343, %v342
    %v354 = vpack.c.b16 %v345, %v344
    %v355 = vpack.c.b16 %v347, %v346
    %364 = vmatpush.bf16.msra.mxu0 %v355
    %365 = vmatpush.bf16.msra.mxu0 %v354
    %366 = vmatpush.bf16.msra.mxu0 %v353
    %367 = vmatpush.bf16.msra.mxu0 %v352
    %368 = vmatpush.bf16.msra.mxu0 %v351
    %369 = vmatpush.bf16.msra.mxu0 %v350
    %370 = vmatpush.bf16.msra.mxu0 %v349
    %371 = vmatpush.bf16.msra.mxu0 %v348
    %372 = vmatmul.bf16.gmra.mxu0 %v295
    %v373 = vpop.f32.mrf.mxu0
    %v374 = vadd.f32 %v314, %v373
    %v375 = vpop.f32.mrf.mxu0
    %v376 = vadd.f32 %v314, %v375
    %377 = vdwg.mxu0
    %v378 = vpack.c.bf16 %v374, %v374
    %v379 = vpack.c.bf16 %v376, %v376
    %380 = vst [vmem:[#allocation10] sm:$0xf] %v378
    %381 = vst [vmem:[#allocation10 + $0x4] sm:$0xf] %v379
    // Predicated region
    $region46: #{tpu_custom_call.1} parent=1 // pred_check
      _
    $region47: #{tpu_custom_call.1} parent=1 // pred_check_branch
      %383 = sbr.rel (0) target = $region49
    $region48: #{tpu_custom_call.1} parent=1 // pred_region
      %385 = vsyncadd [#allocation4], 0
      %s386 = sshll.u32 [#allocation10], 4
      %s387 = int_to_ptr.vmem [resolvable:$true] %s386
      %s388 = sshll.u32 %s7, 4
      %s389 = int_to_ptr.hbm [resolvable:$true] %s388
      %394 = dma.vmem_to_hbm [thread:$0]  %s387, 128, %s389, [#allocation4], 64, 64, 4
    $region49: #{tpu_custom_call.1} parent=1 // pred_fallthru
      _
    // Predicated region
    $region50: #{tpu_custom_call.1} parent=1 // pred_check
      _
    $region51: #{tpu_custom_call.1} parent=1 // pred_check_branch
      %396 = sbr.rel (0) target = $region53
    $region52: #{tpu_custom_call.1} parent=1 // pred_region
      %398 = dma.done [#allocation4], 128
    $region53: #{tpu_custom_call.1} parent=1 // pred_fallthru
      _
    %399 = vsyncpa [#allocation3], 1
    %400 = vsyncpa [#allocation6], 1
    %401 = vsyncpa [#allocation9], 1
    %402 = vsyncpa [#allocation4], 1

// kernel: tpu_custom_call.1
$region0: #{tpu_custom_call.1}
  #allocation0 [shape = 'u32[]', space=smem, size = 0x4, offset = 0x4, fixed_abs, tag = 'smem constant byte address 0x4 - core index']
  #allocation1 [shape = 'u32[72,128]{1,0:T(1,128)}', space=vmem, size = 0x9000, scoped, tag = 'internal scratch']
  %s0 = inlined_call_operand.hbm [shape: f32[16,32], index: 0, kind: input, shape index: {}]
  %s1 = inlined_call_operand.hbm [shape: bf16[32,128], index: 1, kind: input, shape index: {}]
  %s2 = inlined_call_operand.vmem [shape: f32[1,128], index: 2, kind: input, shape index: {}]
  %s3 = inlined_call_operand.hbm [shape: bf16[128,128], index: 3, kind: input, shape index: {}]
  %s4 = inlined_call_operand.vmem [shape: f32[1,128], index: 4, kind: input, shape index: {}]
  %s5 = inlined_call_operand.hbm [shape: bf16[128,128], index: 5, kind: input, shape index: {}]
  %s6 = inlined_call_operand.vmem [shape: f32[1,128], index: 6, kind: input, shape index: {}]
  %s7 = inlined_call_operand.hbm [shape: bf16[16,128], index: 7, kind: output, shape index: {}]
  %s8 = sld [smem:[#allocation0]]
  $region54: #{tpu_custom_call.1} parent=0
    _
  %s10 = ssub.s32 1, %s8
  %s11 = scalar_select 0, %s10, %s8
  $region1: #{tpu_custom_call.1} parent=0
    #allocation2 [shape = 'u8[8192]{0}', space=vmem, size = 0x2000, scoped, tag = 'input window, operand 0, single buffered']
    #allocation3 [shape = 's32[1]{0}', space=sflag, size = 0x4, scoped, tag = 'scoped memory for tpu_custom_call.1']
    #allocation4 [shape = 's32[1]{0}', space=sflag, size = 0x4, scoped, tag = 'scoped memory for tpu_custom_call.1']
    #allocation5 [shape = 'u8[8192]{0}', space=vmem, size = 0x2000, scoped, tag = 'input window, operand 1, single buffered']
    #allocation6 [shape = 's32[1]{0}', space=sflag, size = 0x4, scoped, tag = 'scoped memory for tpu_custom_call.1']
    #allocation7 [shape = 'u8[32768]{0}', space=vmem, size = 0x8000, scoped, tag = 'input window, operand 3, single buffered']
    #allocation8 [shape = 'u8[32768]{0}', space=vmem, size = 0x8000, scoped, tag = 'input window, operand 5, single buffered']
    #allocation9 [shape = 's32[1]{0}', space=sflag, size = 0x4, scoped, tag = 'scoped memory for tpu_custom_call.1']
    #allocation10 [shape = 'u8[4096]{0}', space=vmem, size = 0x1000, scoped, tag = 'output window, operand 0, single buffered']
    %12 = vsyncpa [#allocation3], 0
    %13 = vsyncpa [#allocation6], 0
    %14 = vsyncpa [#allocation9], 0
    %15 = vsyncpa [#allocation4], 0
    // Predicated region
    $region2: #{tpu_custom_call.1} parent=1 // pred_check
      _
    $region3: #{tpu_custom_call.1} parent=1 // pred_check_branch
      %17 = sbr.rel (0) target = $region5
    $region4: #{tpu_custom_call.1} parent=1 // pred_region
      %19 = vsyncadd [#allocation3], 0
      %s20 = sshll.u32 %s0, 4
      %s21 = int_to_ptr.hbm [resolvable:$true] %s20
      %s22 = sshll.u32 [#allocation2], 4
      %s23 = int_to_ptr.vmem [resolvable:$true] %s22
      %28 = dma.hbm_to_vmem [thread:$0]  %s21, 256, %s23, [#allocation3], 128, 128, 8
    $region5: #{tpu_custom_call.1} parent=1 // pred_fallthru
      _
    // Predicated region
    $region6: #{tpu_custom_call.1} parent=1 // pred_check
      _
    $region7: #{tpu_custom_call.1} parent=1 // pred_check_branch
      %30 = sbr.rel (0) target = $region9
    $region8: #{tpu_custom_call.1} parent=1 // pred_region
      %32 = vsyncadd [#allocation6], 0
      %s33 = sshll.u32 %s1, 4
      %s34 = int_to_ptr.hbm [resolvable:$true] %s33
      %s35 = sshll.u32 [#allocation5], 4
      %s36 = int_to_ptr.vmem [resolvable:$true] %s35
      %41 = dma.hbm_to_vmem [thread:$0]  %s34, 256, %s36, [#allocation6], 64, 64, 4
    $region9: #{tpu_custom_call.1} parent=1 // pred_fallthru
      _
    // Predicated region
    $region10: #{tpu_custom_call.1} parent=1 // pred_check
      _
    $region11: #{tpu_custom_call.1} parent=1 // pred_check_branch
      %43 = sbr.rel (0) target = $region13
    $region12: #{tpu_custom_call.1} parent=1 // pred_region
      _
    $region13: #{tpu_custom_call.1} parent=1 // pred_fallthru
      _
    // Predicated region
    $region14: #{tpu_custom_call.1} parent=1 // pred_check
      _
    $region15: #{tpu_custom_call.1} parent=1 // pred_check_branch
      %45 = sbr.rel (0) target = $region17
    $region16: #{tpu_custom_call.1} parent=1 // pred_region
      %47 = vsyncadd [#allocation6], 0
      %s48 = sshll.u32 %s3, 4
      %s49 = int_to_ptr.hbm [resolvable:$true] %s48
      %s50 = sshll.u32 [#allocation7], 4
      %s51 = int_to_ptr.vmem [resolvable:$true] %s50
      %56 = dma.hbm_to_vmem [thread:$0]  %s49, 1024, %s51, [#allocation6], 64, 64, 4
    $region17: #{tpu_custom_call.1} parent=1 // pred_fallthru
      _
    // Predicated region
    $region18: #{tpu_custom_call.1} parent=1 // pred_check
      _
    $region19: #{tpu_custom_call.1} parent=1 // pred_check_branch
      %58 = sbr.rel (0) target = $region21
    $region20: #{tpu_custom_call.1} parent=1 // pred_region
      _
    $region21: #{tpu_custom_call.1} parent=1 // pred_fallthru
      _
    // Predicated region
    $region22: #{tpu_custom_call.1} parent=1 // pred_check
      _
    $region23: #{tpu_custom_call.1} parent=1 // pred_check_branch
      %60 = sbr.rel (0) target = $region25
    $region24: #{tpu_custom_call.1} parent=1 // pred_region
      %62 = vsyncadd [#allocation9], 0
      %s63 = sshll.u32 %s5, 4
      %s64 = int_to_ptr.hbm [resolvable:$true] %s63
      %s65 = sshll.u32 [#allocation8], 4
      %s66 = int_to_ptr.vmem [resolvable:$true] %s65
      %71 = dma.hbm_to_vmem [thread:$0]  %s64, 1024, %s66, [#allocation9], 64, 64, 4
    $region25: #{tpu_custom_call.1} parent=1 // pred_fallthru
      _
    // Predicated region
    $region26: #{tpu_custom_call.1} parent=1 // pred_check
      _
    $region27: #{tpu_custom_call.1} parent=1 // pred_check_branch
      %73 = sbr.rel (0) target = $region29
    $region28: #{tpu_custom_call.1} parent=1 // pred_region
      _
    $region29: #{tpu_custom_call.1} parent=1 // pred_fallthru
      _
    // Predicated region
    $region30: #{tpu_custom_call.1} parent=1 // pred_check
      _
    $region31: #{tpu_custom_call.1} parent=1 // pred_check_branch
      %75 = sbr.rel (0) target = $region33
    $region32: #{tpu_custom_call.1} parent=1 // pred_region
      %77 = dma.done [#allocation3], 256
    $region33: #{tpu_custom_call.1} parent=1 // pred_fallthru
      _
    // Predicated region
    $region34: #{tpu_custom_call.1} parent=1 // pred_check
      _
    $region35: #{tpu_custom_call.1} parent=1 // pred_check_branch
      %79 = sbr.rel (0) target = $region37
    $region36: #{tpu_custom_call.1} parent=1 // pred_region
      %81 = dma.done [#allocation6], 256
    $region37: #{tpu_custom_call.1} parent=1 // pred_fallthru
      _
    // Predicated region
    $region38: #{tpu_custom_call.1} parent=1 // pred_check
      _
    $region39: #{tpu_custom_call.1} parent=1 // pred_check_branch
      %83 = sbr.rel (0) target = $region41
    $region40: #{tpu_custom_call.1} parent=1 // pred_region
      %85 = dma.done [#allocation6], 1024
    $region41: #{tpu_custom_call.1} parent=1 // pred_fallthru
      _
    // Predicated region
    $region42: #{tpu_custom_call.1} parent=1 // pred_check
      _
    $region43: #{tpu_custom_call.1} parent=1 // pred_check_branch
      %87 = sbr.rel (0) target = $region45
    $region44: #{tpu_custom_call.1} parent=1 // pred_region
      %89 = dma.done [#allocation9], 1024
    $region45: #{tpu_custom_call.1} parent=1 // pred_fallthru
      _
    %v91 = vld [vmem:[#allocation2] sm:$0xff]
    %v92 = vld [vmem:[#allocation2 + $0x8] sm:$0xff]
    %v93 = vpack.c.bf16 %v92, %v91
    %v94 = vld [vmem:[#allocation5] sm:$0xf]
    %v95 = vld [vmem:[#allocation5 + $0x4] sm:$0xf]
    %v96 = vld [vmem:[#allocation5 + $0x8] sm:$0xf]
    %v97 = vld [vmem:[#allocation5 + $0xc] sm:$0xf]
    %v98 = vld [vmem:[%s2] sm:$0x1]
    %v100 = vperm.slane %v98, 0
    %v106 = vunpack.c.l.b16 %v94
    %v107 = vunpack.c.l.b16 %v95
    %v108 = vunpack.c.l.b16 %v96
    %v109 = vunpack.c.l.b16 %v97
    %v110 = vpack.c.b16 %v107, %v106
    %v111 = vpack.c.b16 %v109, %v108
    %vm114 = vcmask 261120
    %v116 = vsel %vm114, %v93, 0
    %118 = vmatpush.bf16.msra.mxu0 0
    %119 = vmatpush.bf16.msra.mxu0 0
    %120 = vmatpush.bf16.msra.mxu0 0
    %121 = vmatpush.bf16.msra.mxu0 0
    %122 = vmatpush.bf16.msra.mxu0 0
    %123 = vmatpush.bf16.msra.mxu0 0
    %124 = vmatpush.bf16.msra.mxu0 %v111
    %125 = vmatpush.bf16.msra.mxu0 %v110
    %126 = vmatmul.bf16.gmra.mxu0 %v116
    %v127 = vpop.f32.mrf.mxu0
    %v128 = vadd.f32 %v100, %v127
    %v129 = vpop.f32.mrf.mxu0
    %v130 = vadd.f32 %v100, %v129
    %131 = vdwg.mxu0
    %v132 = vxor.u32 %v128, 2147483648
    %v133 = vxor.u32 %v130, 2147483648
    %v134 = vmul.f32 %v132, 1.442695
    %v135 = vpow.pop %v134
    %v136 = vmul.f32 %v133, 1.442695
    %v137 = vpow.pop %v136
    %v138 = vadd.f32 %v135, 1.0
    %v139 = vadd.f32 %v137, 1.0
    %v140 = vrcp.pop %v138
    %v141 = vmul.f32 %v138, %v140
    %v142 = vsub.f32 1.0, %v141
    %v143 = vmul.f32 %v140, %v142
    %v144 = vadd.f32 %v140, %v143
    %vm145 = vweird.f32 %v138
    %vm146 = vweird.f32 %v140
    %vm147 = vmor %vm145, %vm146
    %v148 = vsel %vm147, %v140, %v144
    %v149 = vand.u32 2147483647, %v138
    %vm150 = vcmp.eq.f32.partialorder %v149, 8.507059e+37
    %v151 = vand.u32 %v138, 2147483648
    %v152 = vor.u32 1.1754944e-38, %v151
    %v153 = vsel %vm150, %v152, %v148
    %v154 = vmul.f32 1.0, %v153
    %v155 = vrcp.pop %v139
    %v156 = vmul.f32 %v139, %v155
    %v157 = vsub.f32 1.0, %v156
    %v158 = vmul.f32 %v155, %v157
    %v159 = vadd.f32 %v155, %v158
    %vm160 = vweird.f32 %v139
    %vm161 = vweird.f32 %v155
    %vm162 = vmor %vm160, %vm161
    %v163 = vsel %vm162, %v155, %v159
    %v164 = vand.u32 2147483647, %v139
    %vm165 = vcmp.eq.f32.partialorder %v164, 8.507059e+37
    %v166 = vand.u32 %v139, 2147483648
    %v167 = vor.u32 1.1754944e-38, %v166
    %v168 = vsel %vm165, %v167, %v163
    %v169 = vmul.f32 1.0, %v168
    %v170 = vmul.f32 %v128, %v154
    %v171 = vmul.f32 %v130, %v169
    %v172 = vpack.c.bf16 %v171, %v170
    %v173 = vld [vmem:[#allocation7] sm:$0xf]
    %v174 = vld [vmem:[#allocation7 + $0x4] sm:$0xf]
    %v175 = vld [vmem:[#allocation7 + $0x8] sm:$0xf]
    %v176 = vld [vmem:[#allocation7 + $0xc] sm:$0xf]
    %v177 = vld [vmem:[#allocation7 + $0x10] sm:$0xf]
    %v178 = vld [vmem:[#allocation7 + $0x14] sm:$0xf]
    %v179 = vld [vmem:[#allocation7 + $0x18] sm:$0xf]
    %v180 = vld [vmem:[#allocation7 + $0x1c] sm:$0xf]
    %v181 = vld [vmem:[#allocation7 + $0x20] sm:$0xf]
    %v182 = vld [vmem:[#allocation7 + $0x24] sm:$0xf]
    %v183 = vld [vmem:[#allocation7 + $0x28] sm:$0xf]
    %v184 = vld [vmem:[#allocation7 + $0x2c] sm:$0xf]
    %v185 = vld [vmem:[#allocation7 + $0x30] sm:$0xf]
    %v186 = vld [vmem:[#allocation7 + $0x34] sm:$0xf]
    %v187 = vld [vmem:[#allocation7 + $0x38] sm:$0xf]
    %v188 = vld [vmem:[#allocation7 + $0x3c] sm:$0xf]
    %v189 = vld [vmem:[%s4] sm:$0x1]
    %v191 = vperm.slane %v189, 0
    %v209 = vunpack.c.l.b16 %v173
    %v210 = vunpack.c.l.b16 %v174
    %v211 = vunpack.c.l.b16 %v175
    %v212 = vunpack.c.l.b16 %v176
    %v213 = vunpack.c.l.b16 %v177
    %v214 = vunpack.c.l.b16 %v178
    %v215 = vunpack.c.l.b16 %v179
    %v216 = vunpack.c.l.b16 %v180
    %v217 = vunpack.c.l.b16 %v181
    %v218 = vunpack.c.l.b16 %v182
    %v219 = vunpack.c.l.b16 %v183
    %v220 = vunpack.c.l.b16 %v184
    %v221 = vunpack.c.l.b16 %v185
    %v222 = vunpack.c.l.b16 %v186
    %v223 = vunpack.c.l.b16 %v187
    %v224 = vunpack.c.l.b16 %v188
    %v225 = vpack.c.b16 %v210, %v209
    %v226 = vpack.c.b16 %v212, %v211
    %v227 = vpack.c.b16 %v214, %v213
    %v228 = vpack.c.b16 %v216, %v215
    %v229 = vpack.c.b16 %v218, %v217
    %v230 = vpack.c.b16 %v220, %v219
    %v231 = vpack.c.b16 %v222, %v221
    %v232 = vpack.c.b16 %v224, %v223
    %241 = vmatpush.bf16.msra.mxu0 %v232
    %242 = vmatpush.bf16.msra.mxu0 %v231
    %243 = vmatpush.bf16.msra.mxu0 %v230
    %244 = vmatpush.bf16.msra.mxu0 %v229
    %245 = vmatpush.bf16.msra.mxu0 %v228
    %246 = vmatpush.bf16.msra.mxu0 %v227
    %247 = vmatpush.bf16.msra.mxu0 %v226
    %248 = vmatpush.bf16.msra.mxu0 %v225
    %249 = vmatmul.bf16.gmra.mxu0 %v172
    %v250 = vpop.f32.mrf.mxu0
    %v251 = vadd.f32 %v191, %v250
    %v252 = vpop.f32.mrf.mxu0
    %v253 = vadd.f32 %v191, %v252
    %254 = vdwg.mxu0
    %v255 = vxor.u32 %v251, 2147483648
    %v256 = vxor.u32 %v253, 2147483648
    %v257 = vmul.f32 %v255, 1.442695
    %v258 = vpow.pop %v257
    %v259 = vmul.f32 %v256, 1.442695
    %v260 = vpow.pop %v259
    %v261 = vadd.f32 %v258, 1.0
    %v262 = vadd.f32 %v260, 1.0
    %v263 = vrcp.pop %v261
    %v264 = vmul.f32 %v261, %v263
    %v265 = vsub.f32 1.0, %v264
    %v266 = vmul.f32 %v263, %v265
    %v267 = vadd.f32 %v263, %v266
    %vm268 = vweird.f32 %v261
    %vm269 = vweird.f32 %v263
    %vm270 = vmor %vm268, %vm269
    %v271 = vsel %vm270, %v263, %v267
    %v272 = vand.u32 2147483647, %v261
    %vm273 = vcmp.eq.f32.partialorder %v272, 8.507059e+37
    %v274 = vand.u32 %v261, 2147483648
    %v275 = vor.u32 1.1754944e-38, %v274
    %v276 = vsel %vm273, %v275, %v271
    %v277 = vmul.f32 1.0, %v276
    %v278 = vrcp.pop %v262
    %v279 = vmul.f32 %v262, %v278
    %v280 = vsub.f32 1.0, %v279
    %v281 = vmul.f32 %v278, %v280
    %v282 = vadd.f32 %v278, %v281
    %vm283 = vweird.f32 %v262
    %vm284 = vweird.f32 %v278
    %vm285 = vmor %vm283, %vm284
    %v286 = vsel %vm285, %v278, %v282
    %v287 = vand.u32 2147483647, %v262
    %vm288 = vcmp.eq.f32.partialorder %v287, 8.507059e+37
    %v289 = vand.u32 %v262, 2147483648
    %v290 = vor.u32 1.1754944e-38, %v289
    %v291 = vsel %vm288, %v290, %v286
    %v292 = vmul.f32 1.0, %v291
    %v293 = vmul.f32 %v251, %v277
    %v294 = vmul.f32 %v253, %v292
    %v295 = vpack.c.bf16 %v294, %v293
    %v296 = vld [vmem:[#allocation8] sm:$0xf]
    %v297 = vld [vmem:[#allocation8 + $0x4] sm:$0xf]
    %v298 = vld [vmem:[#allocation8 + $0x8] sm:$0xf]
    %v299 = vld [vmem:[#allocation8 + $0xc] sm:$0xf]
    %v300 = vld [vmem:[#allocation8 + $0x10] sm:$0xf]
    %v301 = vld [vmem:[#allocation8 + $0x14] sm:$0xf]
    %v302 = vld [vmem:[#allocation8 + $0x18] sm:$0xf]
    %v303 = vld [vmem:[#allocation8 + $0x1c] sm:$0xf]
    %v304 = vld [vmem:[#allocation8 + $0x20] sm:$0xf]
    %v305 = vld [vmem:[#allocation8 + $0x24] sm:$0xf]
    %v306 = vld [vmem:[#allocation8 + $0x28] sm:$0xf]
    %v307 = vld [vmem:[#allocation8 + $0x2c] sm:$0xf]
    %v308 = vld [vmem:[#allocation8 + $0x30] sm:$0xf]
    %v309 = vld [vmem:[#allocation8 + $0x34] sm:$0xf]
    %v310 = vld [vmem:[#allocation8 + $0x38] sm:$0xf]
    %v311 = vld [vmem:[#allocation8 + $0x3c] sm:$0xf]
    %v312 = vld [vmem:[%s6] sm:$0x1]
    %v314 = vperm.slane %v312, 0
    %v332 = vunpack.c.l.b16 %v296
    %v333 = vunpack.c.l.b16 %v297
    %v334 = vunpack.c.l.b16 %v298
    %v335 = vunpack.c.l.b16 %v299
    %v336 = vunpack.c.l.b16 %v300
    %v337 = vunpack.c.l.b16 %v301
    %v338 = vunpack.c.l.b16 %v302
    %v339 = vunpack.c.l.b16 %v303
    %v340 = vunpack.c.l.b16 %v304
    %v341 = vunpack.c.l.b16 %v305
    %v342 = vunpack.c.l.b16 %v306
    %v343 = vunpack.c.l.b16 %v307
    %v344 = vunpack.c.l.b16 %v308
    %v345 = vunpack.c.l.b16 %v309
    %v346 = vunpack.c.l.b16 %v310
    %v347 = vunpack.c.l.b16 %v311
    %v348 = vpack.c.b16 %v333, %v332
    %v349 = vpack.c.b16 %v335, %v334
    %v350 = vpack.c.b16 %v337, %v336
    %v351 = vpack.c.b16 %v339, %v338
    %v352 = vpack.c.b16 %v341, %v340
    %v353 = vpack.c.b16 %v343, %v342
    %v354 = vpack.c.b16 %v345, %v344
    %v355 = vpack.c.b16 %v347, %v346
    %364 = vmatpush.bf16.msra.mxu0 %v355
    %365 = vmatpush.bf16.msra.mxu0 %v354
    %366 = vmatpush.bf16.msra.mxu0 %v353
    %367 = vmatpush.bf16.msra.mxu0 %v352
    %368 = vmatpush.bf16.msra.mxu0 %v351
    %369 = vmatpush.bf16.msra.mxu0 %v350
    %370 = vmatpush.bf16.msra.mxu0 %v349
    %371 = vmatpush.bf16.msra.mxu0 %v348
    %372 = vmatmul.bf16.gmra.mxu0 %v295
    %v373 = vpop.f32.mrf.mxu0
    %v374 = vadd.f32 %v314, %v373
    %v375 = vpop.f32.mrf.mxu0
    %v376 = vadd.f32 %v314, %v375
    %377 = vdwg.mxu0
    %v378 = vpack.c.bf16 %v374, %v374
    %v379 = vpack.c.bf16 %v376, %v376
    %380 = vst [vmem:[#allocation10] sm:$0xf] %v378
    %381 = vst [vmem:[#allocation10 + $0x4] sm:$0xf] %v379
    // Predicated region
    $region46: #{tpu_custom_call.1} parent=1 // pred_check
      _
    $region47: #{tpu_custom_call.1} parent=1 // pred_check_branch
      %383 = sbr.rel (0) target = $region49
    $region48: #{tpu_custom_call.1} parent=1 // pred_region
      %385 = vsyncadd [#allocation4], 0
      %s386 = sshll.u32 [#allocation10], 4
      %s387 = int_to_ptr.vmem [resolvable:$true] %s386
      %s388 = sshll.u32 %s7, 4
      %s389 = int_to_ptr.hbm [resolvable:$true] %s388
      %394 = dma.vmem_to_hbm [thread:$0]  %s387, 128, %s389, [#allocation4], 64, 64, 4
    $region49: #{tpu_custom_call.1} parent=1 // pred_fallthru
      _
    // Predicated region
    $region50: #{tpu_custom_call.1} parent=1 // pred_check
      _
    $region51: #{tpu_custom_call.1} parent=1 // pred_check_branch
      %396 = sbr.rel (0) target = $region53
    $region52: #{tpu_custom_call.1} parent=1 // pred_region
      %398 = dma.done [#allocation4], 128
    $region53: #{tpu_custom_call.1} parent=1 // pred_fallthru
      _
    %399 = vsyncpa [#allocation3], 1
    %400 = vsyncpa [#allocation6], 1
    %401 = vsyncpa [#allocation9], 1
    %402 = vsyncpa [#allocation4], 1

</llo_original>
